<compile_context>
chip_gen: v7x
topology: tpu7x:2x2x1
jax: 0.10.0
libtpu: 0.0.40
codegen_flags: <defaults>
</compile_context>

<pallas_src>
import functools

import jax
import jax.numpy as jnp
from jax.experimental import pallas as pl
from jax.experimental.pallas import tpu as pltpu


# ------------------------------------------------------------------ kernel ---
def _node_encoder_kernel(var_ref, den_ref, tim_ref,
                         typec_ref, invc_ref,
                         w1v_ref, w1d_ref, w1t_ref, b1_ref,
                         w2_ref, b2_ref, gamma_ref, beta_ref,
                         mask_ref, o_ref):
    # var/den/tim: (1, 1, TL, D)   typec: (1, 1, H)   invc: (1, 1, H)
    # w1*: (D, H)  b1/b2/gamma/beta: (1, H)  w2: (H, H)
    # mask: (1, 1, TL, 1)          o: (1, 1, TL, H)
    xv = var_ref[0, 0]          # (TL, D)
    xd = den_ref[0, 0]
    xt = tim_ref[0, 0]

    # Linear 1 (split contraction) + constant (type/invar/bias) terms + ReLU
    h = jnp.dot(xv, w1v_ref[...], preferred_element_type=jnp.float32)
    h = h + jnp.dot(xd, w1d_ref[...], preferred_element_type=jnp.float32)
    h = h + jnp.dot(xt, w1t_ref[...], preferred_element_type=jnp.float32)
    h = h + typec_ref[0] + invc_ref[0] + b1_ref[...]
    h = jnp.maximum(h, 0.0)

    # Linear 2
    y = jnp.dot(h, w2_ref[...], preferred_element_type=jnp.float32) + b2_ref[...]

    # LayerNorm over last dim (biased variance, eps=1e-5, like nn.LayerNorm)
    mean = jnp.mean(y, axis=-1, keepdims=True)
    centered = y - mean
    var = jnp.mean(centered * centered, axis=-1, keepdims=True)
    y = centered * jax.lax.rsqrt(var + 1e-5)
    y = y * gamma_ref[...] + beta_ref[...]

    # Non-pad mask, store
    o_ref[0, 0] = (y * mask_ref[0, 0]).astype(o_ref.dtype)


# ----------------------------------------------------------------- wrapper ---
@jax.jit
def node_encoder_forward(var_emb, density_emb, type_emb, time_enc_k,
                         invar_emb, non_pad_mask, prep):
    """Mirror of Node_Encoder.forward (remove_rep == 'None').

    `prep` is the dict returned by prepare_params() (already transposed /
    split — no per-call weight reshuffling).
    """
    B, K, L, D = var_emb.shape
    H = prep["w2"].shape[1]

    # Tile size over the L axis (second-minor of every block).
    TL = L if L <= 1024 else 1024
    num_l = pl.cdiv(L, TL)

    # Tiny precomputed contributions — avoids physically broadcasting
    # type_emb / invar_emb to (B, K, L, D).
    type2d = jnp.broadcast_to(type_emb, (1, K, 1, D)).reshape(K, D)
    type_c = (type2d @ prep["w1_typ"])[:, None, :]      # (K, 1, H)
    invar_c = (invar_emb @ prep["w1_inv"])[:, None, :]  # (B, 1, H)

    # non_pad_mask: (B, L, K) -> (B, K, L, 1)   (tiny HBM traffic)
    mask = jnp.transpose(non_pad_mask, (0, 2, 1))[..., None].astype(var_emb.dtype)

    row_spec = pl.BlockSpec((1, 1, TL, D), lambda b, k, l: (b, k, l, 0))
    const_spec = pl.BlockSpec((1, H), lambda b, k, l: (0, 0))
    w1_spec = pl.BlockSpec((D, H), lambda b, k, l: (0, 0))

    out = pl.pallas_call(
        _node_encoder_kernel,
        out_shape=jax.ShapeDtypeStruct((B, K, L, H), var_emb.dtype),
        grid=(B, K, num_l),
        in_specs=[
            row_spec,                                                 # var
            row_spec,                                                 # density
            row_spec,                                                 # time
            pl.BlockSpec((1, 1, H), lambda b, k, l: (k, 0, 0)),       # type contrib
            pl.BlockSpec((1, 1, H), lambda b, k, l: (b, 0, 0)),       # invar contrib
            w1_spec,                                                  # w1 (var slice)
            w1_spec,                                                  # w1 (density slice)
            w1_spec,                                                  # w1 (time slice)
            const_spec,                                               # b1
            pl.BlockSpec((H, H), lambda b, k, l: (0, 0)),             # w2
            const_spec,                                               # b2
            const_spec,                                               # gamma
            const_spec,                                               # beta
            pl.BlockSpec((1, 1, TL, 1), lambda b, k, l: (b, k, l, 0)),  # mask
        ],
        out_specs=pl.BlockSpec((1, 1, TL, H), lambda b, k, l: (b, k, l, 0)),
        compiler_params=pltpu.CompilerParams(
            dimension_semantics=("parallel", "parallel", "parallel"),
            vmem_limit_bytes=32 * 1024 * 1024,
        ),
    )(var_emb, density_emb, time_enc_k, type_c, invar_c,
      prep["w1_var"], prep["w1_den"], prep["w1_tim"], prep["b1"],
      prep["w2"], prep["b2"], prep["gamma"], prep["beta"], mask)

    return out


# -------------------------------------------------------------- param prep ---
def prepare_params(params, d_model):
    """One-time conversion of PyTorch-layout params to kernel layout."""
    D = d_model
    w1t = params["w1"].T  # (5D, H); concat order: var, density, type, time, invar
    return {
        "w1_var": w1t[0 * D:1 * D],
        "w1_den": w1t[1 * D:2 * D],
        "w1_typ": w1t[2 * D:3 * D],
        "w1_tim": w1t[3 * D:4 * D],
        "w1_inv": w1t[4 * D:5 * D],
        "b1": params["b1"][None, :],
        "w2": params["w2"].T,
        "b2": params["b2"][None, :],
        "gamma": params["gamma"][None, :],
        "beta": params["beta"][None, :],
    }


# -------------------------------------------------------------- param init ---
def init_params(key, d_model, out_d_model, remove_rep="None"):
    input_dim = 5 * d_model if remove_rep == "None" else 4 * d_model
    k1, k2, k3, k4 = jax.random.split(key, 4)
    lim1 = 1.0 / (input_dim ** 0.5)
    lim2 = 1.0 / (out_d_model ** 0.5)
    return {
        # PyTorch nn.Linear layout: (out_features, in_features)
        "w1": jax.random.uniform(k1, (out_d_model, input_dim),
                                 jnp.float32, -lim1, lim1),
        "b1": jax.random.uniform(k2, (out_d_model,),
                                 jnp.float32, -lim1, lim1),
        "w2": jax.random.uniform(k3, (out_d_model, out_d_model),
                                 jnp.float32, -lim2, lim2),
        "b2": jax.random.uniform(k4, (out_d_model,),
                                 jnp.float32, -lim2, lim2),
        "gamma": jnp.ones((out_d_model,), jnp.float32),
        "beta": jnp.zeros((out_d_model,), jnp.float32),
    }


# --------------------------------------------------------------------- main --
if __name__ == "__main__":
    B, K, L, D = 2, 4, 8, 32
    out_d_model = 32

    key = jax.random.PRNGKey(0)
    keys = jax.random.split(key, 8)

    var_emb = jax.random.normal(keys[0], (B, K, L, D), jnp.float32)
    density_emb = jax.random.normal(keys[1], (B, K, L, D), jnp.float32)
    type_emb = jax.random.normal(keys[2], (1, K, 1, D), jnp.float32)
    time_enc_k = jax.random.normal(keys[3], (B, K, L, D), jnp.float32)
    invar_emb = jax.random.normal(keys[4], (B, D), jnp.float32)
    non_pad_mask = (jax.random.uniform(keys[5], (B, L, K)) > 0.3).astype(jnp.float32)

    params = init_params(keys[6], D, out_d_model, remove_rep="None")
    prep = prepare_params(params, D)

    out = node_encoder_forward(var_emb, density_emb, type_emb, time_enc_k,
                               invar_emb, non_pad_mask, prep)
    jax.block_until_ready(out)

    # sanity: reference in plain JAX (mirrors the PyTorch module exactly)
    type_b = jnp.broadcast_to(type_emb, (B, K, L, D))
    invar_b = jnp.broadcast_to(invar_emb[:, None, None, :], (B, K, L, D))
    inp = jnp.concatenate([var_emb, density_emb, type_b, time_enc_k, invar_b], -1)
    h = jnp.maximum(inp @ params["w1"].T + params["b1"], 0.0)
    y = h @ params["w2"].T + params["b2"]
    mu = y.mean(-1, keepdims=True)
    vr = ((y - mu) ** 2).mean(-1, keepdims=True)
    ref = ((y - mu) / jnp.sqrt(vr + 1e-5)) * params["gamma"] + params["beta"]
    ref = ref * jnp.transpose(non_pad_mask, (0, 2, 1))[..., None]

    assert out.shape == (B, K, L, out_d_model)
    assert jnp.allclose(out, ref, atol=2e-4, rtol=2e-4), (
        float(jnp.max(jnp.abs(out - ref))))

    print("KERNEL_OK")
</pallas_src>

<mosaic_0001>
module attributes {stable_mosaic.version = 11 : i64} {
  func.func @_node_encoder_kernel(%arg0: i32, %arg1: i32, %arg2: i32, %arg3: memref<1x1x8x32xf32, #tpu.memory_space<vmem>>, %arg4: memref<1x1x8x32xf32, #tpu.memory_space<vmem>>, %arg5: memref<1x1x8x32xf32, #tpu.memory_space<vmem>>, %arg6: memref<1x1x32xf32, #tpu.memory_space<vmem>>, %arg7: memref<1x1x32xf32, #tpu.memory_space<vmem>>, %arg8: memref<32x32xf32, #tpu.memory_space<vmem>>, %arg9: memref<32x32xf32, #tpu.memory_space<vmem>>, %arg10: memref<32x32xf32, #tpu.memory_space<vmem>>, %arg11: memref<1x32xf32, #tpu.memory_space<vmem>>, %arg12: memref<32x32xf32, #tpu.memory_space<vmem>>, %arg13: memref<1x32xf32, #tpu.memory_space<vmem>>, %arg14: memref<1x32xf32, #tpu.memory_space<vmem>>, %arg15: memref<1x32xf32, #tpu.memory_space<vmem>>, %arg16: memref<1x1x8x1xf32, #tpu.memory_space<vmem>>, %arg17: memref<1x1x8x32xf32, #tpu.memory_space<vmem>>) attributes {dimension_semantics = [#tpu.dimension_semantics<parallel>, #tpu.dimension_semantics<parallel>, #tpu.dimension_semantics<parallel>], iteration_bounds = array<i64: 2, 4, 1>, scalar_prefetch = 0 : i64, scratch_operands = 0 : i64, tpu.core_type = #tpu.core_type<tc>, window_params = [{transform_indices = @transform_0, window_bounds = array<i64: 1, 1, 8, 32>}, {transform_indices = @transform_1, window_bounds = array<i64: 1, 1, 8, 32>}, {transform_indices = @transform_2, window_bounds = array<i64: 1, 1, 8, 32>}, {transform_indices = @transform_3, window_bounds = array<i64: 1, 1, 32>}, {transform_indices = @transform_4, window_bounds = array<i64: 1, 1, 32>}, {pipeline_mode = #tpu.pipeline_mode<synchronous>, transform_indices = @transform_5, window_bounds = array<i64: 32, 32>}, {pipeline_mode = #tpu.pipeline_mode<synchronous>, transform_indices = @transform_6, window_bounds = array<i64: 32, 32>}, {pipeline_mode = #tpu.pipeline_mode<synchronous>, transform_indices = @transform_7, window_bounds = array<i64: 32, 32>}, {pipeline_mode = #tpu.pipeline_mode<synchronous>, transform_indices = @transform_8, window_bounds = array<i64: 1, 32>}, {pipeline_mode = #tpu.pipeline_mode<synchronous>, transform_indices = @transform_9, window_bounds = array<i64: 32, 32>}, {pipeline_mode = #tpu.pipeline_mode<synchronous>, transform_indices = @transform_10, window_bounds = array<i64: 1, 32>}, {pipeline_mode = #tpu.pipeline_mode<synchronous>, transform_indices = @transform_11, window_bounds = array<i64: 1, 32>}, {pipeline_mode = #tpu.pipeline_mode<synchronous>, transform_indices = @transform_12, window_bounds = array<i64: 1, 32>}, {transform_indices = @transform_13, window_bounds = array<i64: 1, 1, 8, 1>}, {transform_indices = @transform_14, window_bounds = array<i64: 1, 1, 8, 32>}]} {
    %c0 = arith.constant 0 : index
    %c0_0 = arith.constant 0 : index
    %c0_1 = arith.constant 0 : index
    %c0_2 = arith.constant 0 : index
    %0 = vector.load %arg3[%c0, %c0_0, %c0_1, %c0_2] : memref<1x1x8x32xf32, #tpu.memory_space<vmem>>, vector<1x1x8x32xf32>
    %1 = vector.shape_cast %0 : vector<1x1x8x32xf32> to vector<8x32xf32>
    %c0_3 = arith.constant 0 : index
    %c0_4 = arith.constant 0 : index
    %c0_5 = arith.constant 0 : index
    %c0_6 = arith.constant 0 : index
    %2 = vector.load %arg4[%c0_3, %c0_4, %c0_5, %c0_6] : memref<1x1x8x32xf32, #tpu.memory_space<vmem>>, vector<1x1x8x32xf32>
    %3 = vector.shape_cast %2 : vector<1x1x8x32xf32> to vector<8x32xf32>
    %c0_7 = arith.constant 0 : index
    %c0_8 = arith.constant 0 : index
    %c0_9 = arith.constant 0 : index
    %c0_10 = arith.constant 0 : index
    %4 = vector.load %arg5[%c0_7, %c0_8, %c0_9, %c0_10] : memref<1x1x8x32xf32, #tpu.memory_space<vmem>>, vector<1x1x8x32xf32>
    %5 = vector.shape_cast %4 : vector<1x1x8x32xf32> to vector<8x32xf32>
    %c0_11 = arith.constant 0 : index
    %c0_12 = arith.constant 0 : index
    %6 = vector.load %arg8[%c0_11, %c0_12] : memref<32x32xf32, #tpu.memory_space<vmem>>, vector<32x32xf32>
    %cst = arith.constant dense<0.000000e+00> : vector<8x32xf32>
    %7 = tpu.matmul %1, %6, %cst {dimension_numbers = #tpu.dot_dimension_numbers<[1], [0], [0], [1], [0, 0, 1, 1], [], []>} : vector<8x32xf32>, vector<32x32xf32>, vector<8x32xf32> -> vector<8x32xf32>
    %c0_13 = arith.constant 0 : index
    %c0_14 = arith.constant 0 : index
    %8 = vector.load %arg9[%c0_13, %c0_14] : memref<32x32xf32, #tpu.memory_space<vmem>>, vector<32x32xf32>
    %cst_15 = arith.constant dense<0.000000e+00> : vector<8x32xf32>
    %9 = tpu.matmul %3, %8, %cst_15 {dimension_numbers = #tpu.dot_dimension_numbers<[1], [0], [0], [1], [0, 0, 1, 1], [], []>} : vector<8x32xf32>, vector<32x32xf32>, vector<8x32xf32> -> vector<8x32xf32>
    %10 = arith.addf %7, %9 : vector<8x32xf32>
    %c0_16 = arith.constant 0 : index
    %c0_17 = arith.constant 0 : index
    %11 = vector.load %arg10[%c0_16, %c0_17] : memref<32x32xf32, #tpu.memory_space<vmem>>, vector<32x32xf32>
    %cst_18 = arith.constant dense<0.000000e+00> : vector<8x32xf32>
    %12 = tpu.matmul %5, %11, %cst_18 {dimension_numbers = #tpu.dot_dimension_numbers<[1], [0], [0], [1], [0, 0, 1, 1], [], []>} : vector<8x32xf32>, vector<32x32xf32>, vector<8x32xf32> -> vector<8x32xf32>
    %13 = arith.addf %10, %12 : vector<8x32xf32>
    %c0_19 = arith.constant 0 : index
    %c0_20 = arith.constant 0 : index
    %c0_21 = arith.constant 0 : index
    %14 = vector.load %arg6[%c0_19, %c0_20, %c0_21] : memref<1x1x32xf32, #tpu.memory_space<vmem>>, vector<1x1x32xf32>
    %15 = vector.shape_cast %14 : vector<1x1x32xf32> to vector<1x32xf32>
    %16 = vector.broadcast %15 : vector<1x32xf32> to vector<8x32xf32>
    %17 = arith.addf %13, %16 : vector<8x32xf32>
    %c0_22 = arith.constant 0 : index
    %c0_23 = arith.constant 0 : index
    %c0_24 = arith.constant 0 : index
    %18 = vector.load %arg7[%c0_22, %c0_23, %c0_24] : memref<1x1x32xf32, #tpu.memory_space<vmem>>, vector<1x1x32xf32>
    %19 = vector.shape_cast %18 : vector<1x1x32xf32> to vector<1x32xf32>
    %20 = vector.broadcast %19 : vector<1x32xf32> to vector<8x32xf32>
    %21 = arith.addf %17, %20 : vector<8x32xf32>
    %c0_25 = arith.constant 0 : index
    %c0_26 = arith.constant 0 : index
    %22 = vector.load %arg11[%c0_25, %c0_26] : memref<1x32xf32, #tpu.memory_space<vmem>>, vector<1x32xf32>
    %23 = vector.broadcast %22 : vector<1x32xf32> to vector<8x32xf32>
    %24 = arith.addf %21, %23 : vector<8x32xf32>
    %cst_27 = arith.constant 0.000000e+00 : f32
    %25 = vector.broadcast %cst_27 : f32 to vector<8x32xf32>
    %26 = arith.maximumf %24, %25 : vector<8x32xf32>
    %c0_28 = arith.constant 0 : index
    %c0_29 = arith.constant 0 : index
    %27 = vector.load %arg12[%c0_28, %c0_29] : memref<32x32xf32, #tpu.memory_space<vmem>>, vector<32x32xf32>
    %cst_30 = arith.constant dense<0.000000e+00> : vector<8x32xf32>
    %28 = tpu.matmul %26, %27, %cst_30 {dimension_numbers = #tpu.dot_dimension_numbers<[1], [0], [0], [1], [0, 0, 1, 1], [], []>} : vector<8x32xf32>, vector<32x32xf32>, vector<8x32xf32> -> vector<8x32xf32>
    %c0_31 = arith.constant 0 : index
    %c0_32 = arith.constant 0 : index
    %29 = vector.load %arg13[%c0_31, %c0_32] : memref<1x32xf32, #tpu.memory_space<vmem>>, vector<1x32xf32>
    %30 = vector.broadcast %29 : vector<1x32xf32> to vector<8x32xf32>
    %31 = arith.addf %28, %30 : vector<8x32xf32>
    %cst_33 = arith.constant dense<0.000000e+00> : vector<8xf32>
    %32 = vector.multi_reduction <add>, %31, %cst_33 [1] : vector<8x32xf32> to vector<8xf32>
    %33 = vector.shape_cast %32 : vector<8xf32> to vector<8x1xf32>
    %cst_34 = arith.constant 3.200000e+01 : f32
    %34 = vector.broadcast %cst_34 : f32 to vector<8x1xf32>
    %35 = arith.divf %33, %34 : vector<8x1xf32>
    %36 = vector.broadcast %35 : vector<8x1xf32> to vector<8x32xf32>
    %37 = arith.subf %31, %36 : vector<8x32xf32>
    %38 = arith.mulf %37, %37 : vector<8x32xf32>
    %cst_35 = arith.constant dense<0.000000e+00> : vector<8xf32>
    %39 = vector.multi_reduction <add>, %38, %cst_35 [1] : vector<8x32xf32> to vector<8xf32>
    %40 = vector.shape_cast %39 : vector<8xf32> to vector<8x1xf32>
    %cst_36 = arith.constant 3.200000e+01 : f32
    %41 = vector.broadcast %cst_36 : f32 to vector<8x1xf32>
    %42 = arith.divf %40, %41 : vector<8x1xf32>
    %cst_37 = arith.constant 9.99999974E-6 : f32
    %43 = vector.broadcast %cst_37 : f32 to vector<8x1xf32>
    %44 = arith.addf %42, %43 : vector<8x1xf32>
    %45 = math.rsqrt %44 : vector<8x1xf32>
    %46 = vector.broadcast %45 : vector<8x1xf32> to vector<8x32xf32>
    %47 = arith.mulf %37, %46 : vector<8x32xf32>
    %c0_38 = arith.constant 0 : index
    %c0_39 = arith.constant 0 : index
    %48 = vector.load %arg14[%c0_38, %c0_39] : memref<1x32xf32, #tpu.memory_space<vmem>>, vector<1x32xf32>
    %49 = vector.broadcast %48 : vector<1x32xf32> to vector<8x32xf32>
    %50 = arith.mulf %47, %49 : vector<8x32xf32>
    %c0_40 = arith.constant 0 : index
    %c0_41 = arith.constant 0 : index
    %51 = vector.load %arg15[%c0_40, %c0_41] : memref<1x32xf32, #tpu.memory_space<vmem>>, vector<1x32xf32>
    %52 = vector.broadcast %51 : vector<1x32xf32> to vector<8x32xf32>
    %53 = arith.addf %50, %52 : vector<8x32xf32>
    %c0_42 = arith.constant 0 : index
    %c0_43 = arith.constant 0 : index
    %c0_44 = arith.constant 0 : index
    %c0_45 = arith.constant 0 : index
    %54 = vector.load %arg16[%c0_42, %c0_43, %c0_44, %c0_45] : memref<1x1x8x1xf32, #tpu.memory_space<vmem>>, vector<1x1x8x1xf32>
    %55 = vector.shape_cast %54 : vector<1x1x8x1xf32> to vector<8x1xf32>
    %56 = vector.broadcast %55 : vector<8x1xf32> to vector<8x32xf32>
    %57 = arith.mulf %53, %56 : vector<8x32xf32>
    %c0_46 = arith.constant 0 : index
    %c0_47 = arith.constant 0 : index
    %c0_48 = arith.constant 0 : index
    %c0_49 = arith.constant 0 : index
    %58 = vector.load %arg17[%c0_46, %c0_47, %c0_48, %c0_49] : memref<1x1x8x32xf32, #tpu.memory_space<vmem>>, vector<1x1x8x32xf32>
    %59 = vector.shape_cast %58 : vector<1x1x8x32xf32> to vector<8x32xf32>
    %60 = vector.shape_cast %57 : vector<8x32xf32> to vector<1x1x8x32xf32>
    tpu.vector_store %arg17[%c0_46, %c0_47, %c0_48, %c0_49], %60 {strides = array<i32>} : memref<1x1x8x32xf32, #tpu.memory_space<vmem>>, vector<1x1x8x32xf32>,
    return
  }
  func.func @transform_0(%arg0: i32, %arg1: i32, %arg2: i32) -> (i32, i32, i32, i32) {
    %c0_i32 = arith.constant 0 : i32
    %c0_i32_0 = arith.constant 0 : i32
    return %arg0, %arg1, %arg2, %c0_i32 : i32, i32, i32, i32
  }
  func.func @transform_1(%arg0: i32, %arg1: i32, %arg2: i32) -> (i32, i32, i32, i32) {
    %c0_i32 = arith.constant 0 : i32
    %c0_i32_0 = arith.constant 0 : i32
    return %arg0, %arg1, %arg2, %c0_i32 : i32, i32, i32, i32
  }
  func.func @transform_2(%arg0: i32, %arg1: i32, %arg2: i32) -> (i32, i32, i32, i32) {
    %c0_i32 = arith.constant 0 : i32
    %c0_i32_0 = arith.constant 0 : i32
    return %arg0, %arg1, %arg2, %c0_i32 : i32, i32, i32, i32
  }
  func.func @transform_3(%arg0: i32, %arg1: i32, %arg2: i32) -> (i32, i32, i32) {
    %c0_i32 = arith.constant 0 : i32
    %c0_i32_0 = arith.constant 0 : i32
    %c0_i32_1 = arith.constant 0 : i32
    return %arg1, %c0_i32, %c0_i32_0 : i32, i32, i32
  }
  func.func @transform_4(%arg0: i32, %arg1: i32, %arg2: i32) -> (i32, i32, i32) {
    %c0_i32 = arith.constant 0 : i32
    %c0_i32_0 = arith.constant 0 : i32
    %c0_i32_1 = arith.constant 0 : i32
    return %arg0, %c0_i32, %c0_i32_0 : i32, i32, i32
  }
  func.func @transform_5(%arg0: i32, %arg1: i32, %arg2: i32) -> (i32, i32) {
    %c0_i32 = arith.constant 0 : i32
    %c0_i32_0 = arith.constant 0 : i32
    %c0_i32_1 = arith.constant 0 : i32
    return %c0_i32, %c0_i32_0 : i32, i32
  }
  func.func @transform_6(%arg0: i32, %arg1: i32, %arg2: i32) -> (i32, i32) {
    %c0_i32 = arith.constant 0 : i32
    %c0_i32_0 = arith.constant 0 : i32
    %c0_i32_1 = arith.constant 0 : i32
    return %c0_i32, %c0_i32_0 : i32, i32
  }
  func.func @transform_7(%arg0: i32, %arg1: i32, %arg2: i32) -> (i32, i32) {
    %c0_i32 = arith.constant 0 : i32
    %c0_i32_0 = arith.constant 0 : i32
    %c0_i32_1 = arith.constant 0 : i32
    return %c0_i32, %c0_i32_0 : i32, i32
  }
  func.func @transform_8(%arg0: i32, %arg1: i32, %arg2: i32) -> (i32, i32) {
    %c0_i32 = arith.constant 0 : i32
    %c0_i32_0 = arith.constant 0 : i32
    %c0_i32_1 = arith.constant 0 : i32
    return %c0_i32, %c0_i32_0 : i32, i32
  }
  func.func @transform_9(%arg0: i32, %arg1: i32, %arg2: i32) -> (i32, i32) {
    %c0_i32 = arith.constant 0 : i32
    %c0_i32_0 = arith.constant 0 : i32
    %c0_i32_1 = arith.constant 0 : i32
    return %c0_i32, %c0_i32_0 : i32, i32
  }
  func.func @transform_10(%arg0: i32, %arg1: i32, %arg2: i32) -> (i32, i32) {
    %c0_i32 = arith.constant 0 : i32
    %c0_i32_0 = arith.constant 0 : i32
    %c0_i32_1 = arith.constant 0 : i32
    return %c0_i32, %c0_i32_0 : i32, i32
  }
  func.func @transform_11(%arg0: i32, %arg1: i32, %arg2: i32) -> (i32, i32) {
    %c0_i32 = arith.constant 0 : i32
    %c0_i32_0 = arith.constant 0 : i32
    %c0_i32_1 = arith.constant 0 : i32
    return %c0_i32, %c0_i32_0 : i32, i32
  }
  func.func @transform_12(%arg0: i32, %arg1: i32, %arg2: i32) -> (i32, i32) {
    %c0_i32 = arith.constant 0 : i32
    %c0_i32_0 = arith.constant 0 : i32
    %c0_i32_1 = arith.constant 0 : i32
    return %c0_i32, %c0_i32_0 : i32, i32
  }
  func.func @transform_13(%arg0: i32, %arg1: i32, %arg2: i32) -> (i32, i32, i32, i32) {
    %c0_i32 = arith.constant 0 : i32
    %c0_i32_0 = arith.constant 0 : i32
    return %arg0, %arg1, %arg2, %c0_i32 : i32, i32, i32, i32
  }
  func.func @transform_14(%arg0: i32, %arg1: i32, %arg2: i32) -> (i32, i32, i32, i32) {
    %c0_i32 = arith.constant 0 : i32
    %c0_i32_0 = arith.constant 0 : i32
    return %arg0, %arg1, %arg2, %c0_i32 : i32, i32, i32, i32
  }
}

</mosaic_0001>

<llo_original>
// kernel: node_encoder_forward.1
$region0: #{node_encoder_forward.1}
  #allocation0 [shape = 'u32[]', space=smem, size = 0x4, offset = 0x4, fixed_abs, tag = 'smem constant byte address 0x4 - core index']
  #allocation1 [shape = 'u32[144,128]{1,0:T(1,128)}', space=vmem, size = 0x12000, scoped, tag = 'internal scratch']
  %s0 = inlined_call_operand.vmem [shape: f32[2,4,8,32], index: 0, kind: input, shape index: {}]
  %s1 = inlined_call_operand.vmem [shape: f32[2,4,8,32], index: 1, kind: input, shape index: {}]
  %s2 = inlined_call_operand.hbm [shape: f32[2,4,8,32], index: 2, kind: input, shape index: {}]
  %s3 = inlined_call_operand.vmem [shape: f32[4,1,32], index: 3, kind: input, shape index: {}]
  %s4 = inlined_call_operand.vmem [shape: f32[2,1,32], index: 4, kind: input, shape index: {}]
  %s5 = inlined_call_operand.vmem [shape: f32[32,32], index: 5, kind: input, shape index: {}]
  %s6 = inlined_call_operand.vmem [shape: f32[32,32], index: 6, kind: input, shape index: {}]
  %s7 = inlined_call_operand.hbm [shape: f32[32,32], index: 7, kind: input, shape index: {}]
  %s8 = inlined_call_operand.vmem [shape: f32[1,32], index: 8, kind: input, shape index: {}]
  %s9 = inlined_call_operand.hbm [shape: f32[32,32], index: 9, kind: input, shape index: {}]
  %s10 = inlined_call_operand.hbm [shape: f32[1,32], index: 10, kind: input, shape index: {}]
  %s11 = inlined_call_operand.vmem [shape: f32[1,32], index: 11, kind: input, shape index: {}]
  %s12 = inlined_call_operand.hbm [shape: f32[1,32], index: 12, kind: input, shape index: {}]
  %s13 = inlined_call_operand.vmem [shape: f32[2,4,8,1], index: 13, kind: input, shape index: {}]
  %s14 = inlined_call_operand.hbm [shape: f32[2,4,8,32], index: 14, kind: output, shape index: {}]
  %s15 = sld [smem:[#allocation0]]
  $region109: #{node_encoder_forward.1} parent=0
    _
  %s17 = ssub.s32 1, %s15
  %s18 = scalar_select 0, %s17, %s15
  $region1: #{node_encoder_forward.1} parent=0
    #allocation2 [shape = 'u8[8192]{0}', space=vmem, size = 0x2000, scoped, tag = 'input window, operand 2']
    #allocation3 [shape = 's32[2]{0}', space=sflag, size = 0x8, scoped, tag = 'scoped memory for node_encoder_forward.1']
    #allocation4 [shape = 's32[2]{0}', space=sflag, size = 0x8, scoped, tag = 'scoped memory for node_encoder_forward.1']
    #allocation5 [shape = 'u8[16384]{0}', space=vmem, size = 0x4000, scoped, tag = 'input window, operand 7, single buffered']
    #allocation6 [shape = 's32[1]{0}', space=sflag, size = 0x4, scoped, tag = 'scoped memory for node_encoder_forward.1']
    #allocation7 [shape = 'u8[16384]{0}', space=vmem, size = 0x4000, scoped, tag = 'input window, operand 9, single buffered']
    #allocation8 [shape = 'u8[512]{0}', space=vmem, size = 0x400, scoped, tag = 'input window, operand 10, single buffered']
    #allocation9 [shape = 's32[1]{0}', space=sflag, size = 0x4, scoped, tag = 'scoped memory for node_encoder_forward.1']
    #allocation10 [shape = 'u8[512]{0}', space=vmem, size = 0x400, scoped, tag = 'input window, operand 12, single buffered']
    #allocation11 [shape = 'u8[8192]{0}', space=vmem, size = 0x2000, scoped, tag = 'output window, operand 0']
    %19 = vsyncpa [#allocation3], 0
    %s20 = scalar_lea.sflag [#allocation3], 1
    %21 = vsyncpa %s20, 0
    %22 = vsyncpa [#allocation6], 0
    %23 = vsyncpa [#allocation9], 0
    %24 = vsyncpa [#allocation4], 0
    %s25 = scalar_lea.sflag [#allocation4], 1
    %26 = vsyncpa %s25, 0
    loop: start=0, step=1, limit=10
    $region2: #{node_encoder_forward.1} parent=1 // loop_pre_header
      _
    $region3: #{node_encoder_forward.1} parent=1 // loop_header
      %s28 = sphi 0, %s32
      %p29 = scmp.ge.s32.totalorder %s28, 10
      %s35 = sphi 0, %s54
      %s36 = sphi 0, %s50
      %s37 = sphi 0, %s46
      %s38 = sphi 0, %s35
      %s39 = sphi 0, %s36
      %s40 = sphi 0, %s37
      %s41 = sphi 0, %s38
      %s42 = sphi 0, %s39
      %s43 = sphi 0, %s40
      %s61 = sphi 0, %s63
      %s64 = sphi 0, %s61
      %s65 = sphi 0, %s64
      %s81 = sphi 0, %s65
      %s91 = sphi 0, %s93
      %s94 = sphi 0, %s91
      %s95 = sphi 0, %s94
      %s111 = sphi 0, %s95
      %s121 = sphi 0, %s123
      %s124 = sphi 0, %s121
      %s125 = sphi 0, %s124
      %s141 = sphi 0, %s125
      %s147 = sphi 0, %s149
      %s150 = sphi 0, %s147
      %s151 = sphi 0, %s150
      %s167 = sphi 0, %s151
      %s173 = sphi 0, %s175
      %s176 = sphi 0, %s173
      %s177 = sphi 0, %s176
      %s193 = sphi 0, %s177
      %s197 = sphi 0, %s197
      %s199 = sphi 0, %s197
      %s200 = sphi 0, %s199
      %s214 = sphi 0, %s200
      %s218 = sphi 0, %s218
      %s220 = sphi 0, %s218
      %s221 = sphi 0, %s220
      %s235 = sphi 0, %s221
      %s239 = sphi 0, %s239
      %s241 = sphi 0, %s239
      %s242 = sphi 0, %s241
      %s256 = sphi 0, %s242
      %s260 = sphi 0, %s260
      %s262 = sphi 0, %s260
      %s263 = sphi 0, %s262
      %s277 = sphi 0, %s263
      %s281 = sphi 0, %s281
      %s283 = sphi 0, %s281
      %s284 = sphi 0, %s283
      %s298 = sphi 0, %s284
      %s302 = sphi 0, %s302
      %s304 = sphi 0, %s302
      %s305 = sphi 0, %s304
      %s319 = sphi 0, %s305
      %s323 = sphi 0, %s323
      %s325 = sphi 0, %s323
      %s326 = sphi 0, %s325
      %s340 = sphi 0, %s326
      %s344 = sphi 0, %s344
      %s346 = sphi 0, %s344
      %s347 = sphi 0, %s346
      %s361 = sphi 0, %s347
      %s371 = sphi 0, %s373
      %s374 = sphi 0, %s371
      %s375 = sphi 0, %s374
      %s391 = sphi 0, %s375
      %s401 = sphi 0, %s403
      %s404 = sphi 0, %s401
      %s405 = sphi 0, %s404
      %s421 = sphi 0, %s405
    $region4: #{node_encoder_forward.1} parent=1 // loop_header_branch
      %31 = sbr.rel (%p29) target = $region8
    $region5: #{node_encoder_forward.1} parent=1 // loop_body
      %s33 = ssub.s32 %s28, 1
      %s34 = ssub.s32 %s28, 2
      %s44 = sadd.s32 1, %s37
      %p45 = scmp.ge.s32.totalorder %s44, 1
      %s46 = scalar_select %p45, 0, %s44
      %s47 = sadd.s32 1, %s36
      %s48 = scalar_select %p45, %s47, %s36
      %p49 = scmp.ge.s32.totalorder %s48, 4
      %s50 = scalar_select %p49, 0, %s48
      %s51 = sadd.s32 1, %s35
      %s52 = scalar_select %p49, %s51, %s35
      %p53 = scmp.ge.s32.totalorder %s52, 2
      %s54 = scalar_select %p53, 0, %s52
      %s55 = ssub.s32 %s35, %s54
      %s56 = ssub.s32 %s36, %s50
      %s57 = sor.u32 %s55, %s56
      %s58 = ssub.s32 %s37, %s46
      %s59 = sor.u32 %s57, %s58
      %p60 = scmp.eq.s32.totalorder %s59, 0
      %s62 = sadd.s32 %s61, 1
      %s63 = scalar_select %p60, %s61, %s62
      %p66 = pneg %p60
      %p67 = scmp.eq.s32.totalorder %s28, 7
      %p68 = por %p66, %p67
      %p69 = scmp.ne.s32.totalorder %s61, %s64
      %p70 = scmp.eq.s32.totalorder %s28, 0
      %p71 = por %p69, %p70
      %p72 = scmp.ne.s32.totalorder %s61, %s64
      %p73 = scmp.eq.s32.totalorder %s33, 7
      %p74 = por %p72, %p73
      %p75 = scmp.ne.s32.totalorder %s64, %s65
      %p76 = scmp.eq.s32.totalorder %s33, 0
      %p77 = por %p75, %p76
      %p78 = scmp.ne.s32.totalorder %s64, %s65
      %p79 = scmp.eq.s32.totalorder %s34, 7
      %p80 = por %p78, %p79
      %p82 = scmp.ne.s32.totalorder %s65, %s81
      %p83 = scmp.eq.s32.totalorder %s34, 0
      %p84 = por %p82, %p83
      %s85 = ssub.s32 %s35, %s54
      %s86 = ssub.s32 %s36, %s50
      %s87 = sor.u32 %s85, %s86
      %s88 = ssub.s32 %s37, %s46
      %s89 = sor.u32 %s87, %s88
      %p90 = scmp.eq.s32.totalorder %s89, 0
      %s92 = sadd.s32 %s91, 1
      %s93 = scalar_select %p90, %s91, %s92
      %p96 = pneg %p90
      %p97 = scmp.eq.s32.totalorder %s28, 7
      %p98 = por %p96, %p97
      %p99 = scmp.ne.s32.totalorder %s91, %s94
      %p100 = scmp.eq.s32.totalorder %s28, 0
      %p101 = por %p99, %p100
      %p102 = scmp.ne.s32.totalorder %s91, %s94
      %p103 = scmp.eq.s32.totalorder %s33, 7
      %p104 = por %p102, %p103
      %p105 = scmp.ne.s32.totalorder %s94, %s95
      %p106 = scmp.eq.s32.totalorder %s33, 0
      %p107 = por %p105, %p106
      %p108 = scmp.ne.s32.totalorder %s94, %s95
      %p109 = scmp.eq.s32.totalorder %s34, 7
      %p110 = por %p108, %p109
      %p112 = scmp.ne.s32.totalorder %s95, %s111
      %p113 = scmp.eq.s32.totalorder %s34, 0
      %p114 = por %p112, %p113
      %s115 = ssub.s32 %s35, %s54
      %s116 = ssub.s32 %s36, %s50
      %s117 = sor.u32 %s115, %s116
      %s118 = ssub.s32 %s37, %s46
      %s119 = sor.u32 %s117, %s118
      %p120 = scmp.eq.s32.totalorder %s119, 0
      %s122 = sadd.s32 %s121, 1
      %s123 = scalar_select %p120, %s121, %s122
      %p126 = pneg %p120
      %p127 = scmp.eq.s32.totalorder %s28, 7
      %p128 = por %p126, %p127
      %p129 = scmp.ne.s32.totalorder %s121, %s124
      %p130 = scmp.eq.s32.totalorder %s28, 0
      %p131 = por %p129, %p130
      %p132 = scmp.ne.s32.totalorder %s121, %s124
      %p133 = scmp.eq.s32.totalorder %s33, 7
      %p134 = por %p132, %p133
      %p135 = scmp.ne.s32.totalorder %s124, %s125
      %p136 = scmp.eq.s32.totalorder %s33, 0
      %p137 = por %p135, %p136
      %p138 = scmp.ne.s32.totalorder %s124, %s125
      %p139 = scmp.eq.s32.totalorder %s34, 7
      %p140 = por %p138, %p139
      %p142 = scmp.ne.s32.totalorder %s125, %s141
      %p143 = scmp.eq.s32.totalorder %s34, 0
      %p144 = por %p142, %p143
      %s145 = ssub.s32 %s36, %s50
      %p146 = scmp.eq.s32.totalorder %s145, 0
      %s148 = sadd.s32 %s147, 1
      %s149 = scalar_select %p146, %s147, %s148
      %p152 = pneg %p146
      %p153 = scmp.eq.s32.totalorder %s28, 7
      %p154 = por %p152, %p153
      %p155 = scmp.ne.s32.totalorder %s147, %s150
      %p156 = scmp.eq.s32.totalorder %s28, 0
      %p157 = por %p155, %p156
      %p158 = scmp.ne.s32.totalorder %s147, %s150
      %p159 = scmp.eq.s32.totalorder %s33, 7
      %p160 = por %p158, %p159
      %p161 = scmp.ne.s32.totalorder %s150, %s151
      %p162 = scmp.eq.s32.totalorder %s33, 0
      %p163 = por %p161, %p162
      %p164 = scmp.ne.s32.totalorder %s150, %s151
      %p165 = scmp.eq.s32.totalorder %s34, 7
      %p166 = por %p164, %p165
      %p168 = scmp.ne.s32.totalorder %s151, %s167
      %p169 = scmp.eq.s32.totalorder %s34, 0
      %p170 = por %p168, %p169
      %s171 = ssub.s32 %s35, %s54
      %p172 = scmp.eq.s32.totalorder %s171, 0
      %s174 = sadd.s32 %s173, 1
      %s175 = scalar_select %p172, %s173, %s174
      %p178 = pneg %p172
      %p179 = scmp.eq.s32.totalorder %s28, 7
      %p180 = por %p178, %p179
      %p181 = scmp.ne.s32.totalorder %s173, %s176
      %p182 = scmp.eq.s32.totalorder %s28, 0
      %p183 = por %p181, %p182
      %p184 = scmp.ne.s32.totalorder %s173, %s176
      %p185 = scmp.eq.s32.totalorder %s33, 7
      %p186 = por %p184, %p185
      %p187 = scmp.ne.s32.totalorder %s176, %s177
      %p188 = scmp.eq.s32.totalorder %s33, 0
      %p189 = por %p187, %p188
      %p190 = scmp.ne.s32.totalorder %s176, %s177
      %p191 = scmp.eq.s32.totalorder %s34, 7
      %p192 = por %p190, %p191
      %p194 = scmp.ne.s32.totalorder %s177, %s193
      %p195 = scmp.eq.s32.totalorder %s34, 0
      %p196 = por %p194, %p195
      %s198 = sadd.s32 %s197, 1
      %p201 = scmp.eq.s32.totalorder %s28, 7
      %p202 = scmp.ne.s32.totalorder %s197, %s199
      %p203 = scmp.eq.s32.totalorder %s28, 0
      %p204 = por %p202, %p203
      %p205 = scmp.ne.s32.totalorder %s197, %s199
      %p206 = scmp.eq.s32.totalorder %s33, 7
      %p207 = por %p205, %p206
      %p208 = scmp.ne.s32.totalorder %s199, %s200
      %p209 = scmp.eq.s32.totalorder %s33, 0
      %p210 = por %p208, %p209
      %p211 = scmp.ne.s32.totalorder %s199, %s200
      %p212 = scmp.eq.s32.totalorder %s34, 7
      %p213 = por %p211, %p212
      %p215 = scmp.ne.s32.totalorder %s200, %s214
      %p216 = scmp.eq.s32.totalorder %s34, 0
      %p217 = por %p215, %p216
      %s219 = sadd.s32 %s218, 1
      %p222 = scmp.eq.s32.totalorder %s28, 7
      %p223 = scmp.ne.s32.totalorder %s218, %s220
      %p224 = scmp.eq.s32.totalorder %s28, 0
      %p225 = por %p223, %p224
      %p226 = scmp.ne.s32.totalorder %s218, %s220
      %p227 = scmp.eq.s32.totalorder %s33, 7
      %p228 = por %p226, %p227
      %p229 = scmp.ne.s32.totalorder %s220, %s221
      %p230 = scmp.eq.s32.totalorder %s33, 0
      %p231 = por %p229, %p230
      %p232 = scmp.ne.s32.totalorder %s220, %s221
      %p233 = scmp.eq.s32.totalorder %s34, 7
      %p234 = por %p232, %p233
      %p236 = scmp.ne.s32.totalorder %s221, %s235
      %p237 = scmp.eq.s32.totalorder %s34, 0
      %p238 = por %p236, %p237
      %s240 = sadd.s32 %s239, 1
      %p243 = scmp.eq.s32.totalorder %s28, 7
      %p244 = scmp.ne.s32.totalorder %s239, %s241
      %p245 = scmp.eq.s32.totalorder %s28, 0
      %p246 = por %p244, %p245
      %p247 = scmp.ne.s32.totalorder %s239, %s241
      %p248 = scmp.eq.s32.totalorder %s33, 7
      %p249 = por %p247, %p248
      %p250 = scmp.ne.s32.totalorder %s241, %s242
      %p251 = scmp.eq.s32.totalorder %s33, 0
      %p252 = por %p250, %p251
      %p253 = scmp.ne.s32.totalorder %s241, %s242
      %p254 = scmp.eq.s32.totalorder %s34, 7
      %p255 = por %p253, %p254
      %p257 = scmp.ne.s32.totalorder %s242, %s256
      %p258 = scmp.eq.s32.totalorder %s34, 0
      %p259 = por %p257, %p258
      %s261 = sadd.s32 %s260, 1
      %p264 = scmp.eq.s32.totalorder %s28, 7
      %p265 = scmp.ne.s32.totalorder %s260, %s262
      %p266 = scmp.eq.s32.totalorder %s28, 0
      %p267 = por %p265, %p266
      %p268 = scmp.ne.s32.totalorder %s260, %s262
      %p269 = scmp.eq.s32.totalorder %s33, 7
      %p270 = por %p268, %p269
      %p271 = scmp.ne.s32.totalorder %s262, %s263
      %p272 = scmp.eq.s32.totalorder %s33, 0
      %p273 = por %p271, %p272
      %p274 = scmp.ne.s32.totalorder %s262, %s263
      %p275 = scmp.eq.s32.totalorder %s34, 7
      %p276 = por %p274, %p275
      %p278 = scmp.ne.s32.totalorder %s263, %s277
      %p279 = scmp.eq.s32.totalorder %s34, 0
      %p280 = por %p278, %p279
      %s282 = sadd.s32 %s281, 1
      %p285 = scmp.eq.s32.totalorder %s28, 7
      %p286 = scmp.ne.s32.totalorder %s281, %s283
      %p287 = scmp.eq.s32.totalorder %s28, 0
      %p288 = por %p286, %p287
      %p289 = scmp.ne.s32.totalorder %s281, %s283
      %p290 = scmp.eq.s32.totalorder %s33, 7
      %p291 = por %p289, %p290
      %p292 = scmp.ne.s32.totalorder %s283, %s284
      %p293 = scmp.eq.s32.totalorder %s33, 0
      %p294 = por %p292, %p293
      %p295 = scmp.ne.s32.totalorder %s283, %s284
      %p296 = scmp.eq.s32.totalorder %s34, 7
      %p297 = por %p295, %p296
      %p299 = scmp.ne.s32.totalorder %s284, %s298
      %p300 = scmp.eq.s32.totalorder %s34, 0
      %p301 = por %p299, %p300
      %s303 = sadd.s32 %s302, 1
      %p306 = scmp.eq.s32.totalorder %s28, 7
      %p307 = scmp.ne.s32.totalorder %s302, %s304
      %p308 = scmp.eq.s32.totalorder %s28, 0
      %p309 = por %p307, %p308
      %p310 = scmp.ne.s32.totalorder %s302, %s304
      %p311 = scmp.eq.s32.totalorder %s33, 7
      %p312 = por %p310, %p311
      %p313 = scmp.ne.s32.totalorder %s304, %s305
      %p314 = scmp.eq.s32.totalorder %s33, 0
      %p315 = por %p313, %p314
      %p316 = scmp.ne.s32.totalorder %s304, %s305
      %p317 = scmp.eq.s32.totalorder %s34, 7
      %p318 = por %p316, %p317
      %p320 = scmp.ne.s32.totalorder %s305, %s319
      %p321 = scmp.eq.s32.totalorder %s34, 0
      %p322 = por %p320, %p321
      %s324 = sadd.s32 %s323, 1
      %p327 = scmp.eq.s32.totalorder %s28, 7
      %p328 = scmp.ne.s32.totalorder %s323, %s325
      %p329 = scmp.eq.s32.totalorder %s28, 0
      %p330 = por %p328, %p329
      %p331 = scmp.ne.s32.totalorder %s323, %s325
      %p332 = scmp.eq.s32.totalorder %s33, 7
      %p333 = por %p331, %p332
      %p334 = scmp.ne.s32.totalorder %s325, %s326
      %p335 = scmp.eq.s32.totalorder %s33, 0
      %p336 = por %p334, %p335
      %p337 = scmp.ne.s32.totalorder %s325, %s326
      %p338 = scmp.eq.s32.totalorder %s34, 7
      %p339 = por %p337, %p338
      %p341 = scmp.ne.s32.totalorder %s326, %s340
      %p342 = scmp.eq.s32.totalorder %s34, 0
      %p343 = por %p341, %p342
      %s345 = sadd.s32 %s344, 1
      %p348 = scmp.eq.s32.totalorder %s28, 7
      %p349 = scmp.ne.s32.totalorder %s344, %s346
      %p350 = scmp.eq.s32.totalorder %s28, 0
      %p351 = por %p349, %p350
      %p352 = scmp.ne.s32.totalorder %s344, %s346
      %p353 = scmp.eq.s32.totalorder %s33, 7
      %p354 = por %p352, %p353
      %p355 = scmp.ne.s32.totalorder %s346, %s347
      %p356 = scmp.eq.s32.totalorder %s33, 0
      %p357 = por %p355, %p356
      %p358 = scmp.ne.s32.totalorder %s346, %s347
      %p359 = scmp.eq.s32.totalorder %s34, 7
      %p360 = por %p358, %p359
      %p362 = scmp.ne.s32.totalorder %s347, %s361
      %p363 = scmp.eq.s32.totalorder %s34, 0
      %p364 = por %p362, %p363
      %s365 = ssub.s32 %s35, %s54
      %s366 = ssub.s32 %s36, %s50
      %s367 = sor.u32 %s365, %s366
      %s368 = ssub.s32 %s37, %s46
      %s369 = sor.u32 %s367, %s368
      %p370 = scmp.eq.s32.totalorder %s369, 0
      %s372 = sadd.s32 %s371, 1
      %s373 = scalar_select %p370, %s371, %s372
      %p376 = pneg %p370
      %p377 = scmp.eq.s32.totalorder %s28, 7
      %p378 = por %p376, %p377
      %p379 = scmp.ne.s32.totalorder %s371, %s374
      %p380 = scmp.eq.s32.totalorder %s28, 0
      %p381 = por %p379, %p380
      %p382 = scmp.ne.s32.totalorder %s371, %s374
      %p383 = scmp.eq.s32.totalorder %s33, 7
      %p384 = por %p382, %p383
      %p385 = scmp.ne.s32.totalorder %s374, %s375
      %p386 = scmp.eq.s32.totalorder %s33, 0
      %p387 = por %p385, %p386
      %p388 = scmp.ne.s32.totalorder %s374, %s375
      %p389 = scmp.eq.s32.totalorder %s34, 7
      %p390 = por %p388, %p389
      %p392 = scmp.ne.s32.totalorder %s375, %s391
      %p393 = scmp.eq.s32.totalorder %s34, 0
      %p394 = por %p392, %p393
      %s395 = ssub.s32 %s35, %s54
      %s396 = ssub.s32 %s36, %s50
      %s397 = sor.u32 %s395, %s396
      %s398 = ssub.s32 %s37, %s46
      %s399 = sor.u32 %s397, %s398
      %p400 = scmp.eq.s32.totalorder %s399, 0
      %s402 = sadd.s32 %s401, 1
      %s403 = scalar_select %p400, %s401, %s402
      %p406 = pneg %p400
      %p407 = scmp.eq.s32.totalorder %s28, 7
      %p408 = por %p406, %p407
      %p409 = scmp.ne.s32.totalorder %s401, %s404
      %p410 = scmp.eq.s32.totalorder %s28, 0
      %p411 = por %p409, %p410
      %p412 = scmp.ne.s32.totalorder %s401, %s404
      %p413 = scmp.eq.s32.totalorder %s33, 7
      %p414 = por %p412, %p413
      %p415 = scmp.ne.s32.totalorder %s404, %s405
      %p416 = scmp.eq.s32.totalorder %s33, 0
      %p417 = por %p415, %p416
      %p418 = scmp.ne.s32.totalorder %s404, %s405
      %p419 = scmp.eq.s32.totalorder %s34, 7
      %p420 = por %p418, %p419
      %p422 = scmp.ne.s32.totalorder %s405, %s421
      %p423 = scmp.eq.s32.totalorder %s34, 0
      %p424 = por %p422, %p423
      %p425 = scmp.le.s32.totalorder 1, %s28
      %p426 = scmp.lt.s32.totalorder %s28, 9
      %p427 = pnand %p425, %p426
      %p428 = pneg %p427
      // Predicated region
      $region9: #{node_encoder_forward.1} parent=5 // pred_check
        _
      $region10: #{node_encoder_forward.1} parent=5 // pred_check_branch
        %430 = sbr.rel (%p427) target = $region12
      $region11: #{node_encoder_forward.1} parent=5 // pred_region
        %s431 = ssub.s32 %s28, 1
        // Predicated region
        $region13: #{node_encoder_forward.1} parent=11 // pred_check
          %p432 = pneg %p210
        $region14: #{node_encoder_forward.1} parent=11 // pred_check_branch
          %434 = sbr.rel (%p432) target = $region16
        $region15: #{node_encoder_forward.1} parent=11 // pred_region
          _
        $region16: #{node_encoder_forward.1} parent=11 // pred_fallthru
          _
        // Predicated region
        $region17: #{node_encoder_forward.1} parent=11 // pred_check
          %p435 = pneg %p231
        $region18: #{node_encoder_forward.1} parent=11 // pred_check_branch
          %437 = sbr.rel (%p435) target = $region20
        $region19: #{node_encoder_forward.1} parent=11 // pred_region
          _
        $region20: #{node_encoder_forward.1} parent=11 // pred_fallthru
          _
        // Predicated region
        $region21: #{node_encoder_forward.1} parent=11 // pred_check
          %p438 = pneg %p252
        $region22: #{node_encoder_forward.1} parent=11 // pred_check_branch
          %440 = sbr.rel (%p438) target = $region24
        $region23: #{node_encoder_forward.1} parent=11 // pred_region
          %s442 = ssub.s32 512, 512
          %443 = vsyncadd [#allocation6], %s442
          %s444 = sshll.u32 [#allocation5], 4
          %s445 = int_to_ptr.vmem [resolvable:$true] %s444
          %450 = dma.hbm_to_vmem [thread:$0]  %s7, 512, %s445, [#allocation6], 128, 128, 8
        $region24: #{node_encoder_forward.1} parent=11 // pred_fallthru
          _
        // Predicated region
        $region25: #{node_encoder_forward.1} parent=11 // pred_check
          %p451 = pneg %p273
        $region26: #{node_encoder_forward.1} parent=11 // pred_check_branch
          %453 = sbr.rel (%p451) target = $region28
        $region27: #{node_encoder_forward.1} parent=11 // pred_region
          _
        $region28: #{node_encoder_forward.1} parent=11 // pred_fallthru
          _
        // Predicated region
        $region29: #{node_encoder_forward.1} parent=11 // pred_check
          %p454 = pneg %p294
        $region30: #{node_encoder_forward.1} parent=11 // pred_check_branch
          %456 = sbr.rel (%p454) target = $region32
        $region31: #{node_encoder_forward.1} parent=11 // pred_region
          %s458 = ssub.s32 512, 512
          %459 = vsyncadd [#allocation6], %s458
          %s460 = sshll.u32 [#allocation7], 4
          %s461 = int_to_ptr.vmem [resolvable:$true] %s460
          %466 = dma.hbm_to_vmem [thread:$0]  %s9, 512, %s461, [#allocation6], 128, 128, 8
        $region32: #{node_encoder_forward.1} parent=11 // pred_fallthru
          _
        // Predicated region
        $region33: #{node_encoder_forward.1} parent=11 // pred_check
          %p467 = pneg %p315
        $region34: #{node_encoder_forward.1} parent=11 // pred_check_branch
          %469 = sbr.rel (%p467) target = $region36
        $region35: #{node_encoder_forward.1} parent=11 // pred_region
          %s471 = ssub.s32 16, 16
          %472 = vsyncadd [#allocation9], %s471
          %s474 = sshll.u32 [#allocation8], 4
          %s475 = int_to_ptr.vmem [resolvable:$true] %s474
          %477 = dma.hbm_to_vmem [thread:$0]  %s10, 16, %s475, [#allocation9]
        $region36: #{node_encoder_forward.1} parent=11 // pred_fallthru
          _
        // Predicated region
        $region37: #{node_encoder_forward.1} parent=11 // pred_check
          %p478 = pneg %p336
        $region38: #{node_encoder_forward.1} parent=11 // pred_check_branch
          %480 = sbr.rel (%p478) target = $region40
        $region39: #{node_encoder_forward.1} parent=11 // pred_region
          _
        $region40: #{node_encoder_forward.1} parent=11 // pred_fallthru
          _
        // Predicated region
        $region41: #{node_encoder_forward.1} parent=11 // pred_check
          %p481 = pneg %p357
        $region42: #{node_encoder_forward.1} parent=11 // pred_check_branch
          %483 = sbr.rel (%p481) target = $region44
        $region43: #{node_encoder_forward.1} parent=11 // pred_region
          %s485 = ssub.s32 16, 16
          %486 = vsyncadd [#allocation9], %s485
          %s488 = sshll.u32 [#allocation10], 4
          %s489 = int_to_ptr.vmem [resolvable:$true] %s488
          %491 = dma.hbm_to_vmem [thread:$0]  %s12, 16, %s489, [#allocation9]
        $region44: #{node_encoder_forward.1} parent=11 // pred_fallthru
          _
      $region12: #{node_encoder_forward.1} parent=5 // pred_fallthru
        _
      %p492 = scmp.lt.s32.totalorder %s28, 8
      // Predicated region
      $region45: #{node_encoder_forward.1} parent=5 // pred_check
        %p493 = pneg %p492
      $region46: #{node_encoder_forward.1} parent=5 // pred_check_branch
        %495 = sbr.rel (%p493) target = $region48
      $region47: #{node_encoder_forward.1} parent=5 // pred_region
        // Predicated region
        $region49: #{node_encoder_forward.1} parent=47 // pred_check
          %p496 = pneg %p71
        $region50: #{node_encoder_forward.1} parent=47 // pred_check_branch
          %498 = sbr.rel (%p496) target = $region52
        $region51: #{node_encoder_forward.1} parent=47 // pred_region
          %p499 = scmp.lt.s32.totalorder %s35, 1
          %s500 = scalar_select %p499, %s35, 1
          %p501 = scmp.lt.s32.totalorder %s36, 3
          %s502 = scalar_select %p501, %s36, 3
          %p503 = scmp.lt.s32.totalorder %s37, 0
          %s504 = scalar_select %p503, %s37, 0
          %s505 = sadd.s32 %s504, %s502
          %s506 = smul.addr %s500, 4
          %s507 = sadd.s32 %s505, %s506
          %s508 = smul.addr %s507, 8
          %s509 = scalar_lea.vmem %s0, %s508
        $region52: #{node_encoder_forward.1} parent=47 // pred_fallthru
          _
        // Predicated region
        $region53: #{node_encoder_forward.1} parent=47 // pred_check
          %p510 = pneg %p101
        $region54: #{node_encoder_forward.1} parent=47 // pred_check_branch
          %512 = sbr.rel (%p510) target = $region56
        $region55: #{node_encoder_forward.1} parent=47 // pred_region
          %p513 = scmp.lt.s32.totalorder %s35, 1
          %s514 = scalar_select %p513, %s35, 1
          %p515 = scmp.lt.s32.totalorder %s36, 3
          %s516 = scalar_select %p515, %s36, 3
          %p517 = scmp.lt.s32.totalorder %s37, 0
          %s518 = scalar_select %p517, %s37, 0
          %s519 = sadd.s32 %s518, %s516
          %s520 = smul.addr %s514, 4
          %s521 = sadd.s32 %s519, %s520
          %s522 = smul.addr %s521, 8
          %s523 = scalar_lea.vmem %s1, %s522
        $region56: #{node_encoder_forward.1} parent=47 // pred_fallthru
          _
        // Predicated region
        $region57: #{node_encoder_forward.1} parent=47 // pred_check
          %p524 = pneg %p131
        $region58: #{node_encoder_forward.1} parent=47 // pred_check_branch
          %526 = sbr.rel (%p524) target = $region60
        $region59: #{node_encoder_forward.1} parent=47 // pred_region
          %s527 = sand.u32 %s121, 1
          %s528 = scalar_lea.sflag [#allocation3], %s527
          %s529 = sand.u32 %s121, 1
          %s530 = smul.addr %s529, 8
          %s531 = scalar_lea.vmem [#allocation2], %s530
          %s533 = ssub.s32 128, 128
          %534 = vsyncadd %s528, %s533
          %s535 = sadd.s32 %s37, %s36
          %s536 = smul.addr %s35, 4
          %s537 = sadd.s32 %s535, %s536
          %s538 = smul.addr %s537, 128
          %s539 = scalar_lea.hbm %s2, %s538
          %s541 = sshll.u32 %s531, 4
          %s542 = int_to_ptr.vmem [resolvable:$true] %s541
          %544 = dma.hbm_to_vmem [thread:$0]  %s539, 128, %s542, %s528
        $region60: #{node_encoder_forward.1} parent=47 // pred_fallthru
          _
        // Predicated region
        $region61: #{node_encoder_forward.1} parent=47 // pred_check
          %p545 = pneg %p157
        $region62: #{node_encoder_forward.1} parent=47 // pred_check_branch
          %547 = sbr.rel (%p545) target = $region64
        $region63: #{node_encoder_forward.1} parent=47 // pred_region
          %p548 = scmp.lt.s32.totalorder %s36, 3
          %s549 = scalar_select %p548, %s36, 3
          %s550 = scalar_lea.vmem %s3, %s549
        $region64: #{node_encoder_forward.1} parent=47 // pred_fallthru
          _
        // Predicated region
        $region65: #{node_encoder_forward.1} parent=47 // pred_check
          %p551 = pneg %p183
        $region66: #{node_encoder_forward.1} parent=47 // pred_check_branch
          %553 = sbr.rel (%p551) target = $region68
        $region67: #{node_encoder_forward.1} parent=47 // pred_region
          %p554 = scmp.lt.s32.totalorder %s35, 1
          %s555 = scalar_select %p554, %s35, 1
          %s556 = scalar_lea.vmem %s4, %s555
        $region68: #{node_encoder_forward.1} parent=47 // pred_fallthru
          _
        // Predicated region
        $region69: #{node_encoder_forward.1} parent=47 // pred_check
          %p557 = pneg %p381
        $region70: #{node_encoder_forward.1} parent=47 // pred_check_branch
          %559 = sbr.rel (%p557) target = $region72
        $region71: #{node_encoder_forward.1} parent=47 // pred_region
          %p560 = scmp.lt.s32.totalorder %s35, 1
          %s561 = scalar_select %p560, %s35, 1
          %p562 = scmp.lt.s32.totalorder %s36, 3
          %s563 = scalar_select %p562, %s36, 3
          %p564 = scmp.lt.s32.totalorder %s37, 0
          %s565 = scalar_select %p564, %s37, 0
          %s566 = sadd.s32 %s565, %s563
          %s567 = smul.addr %s561, 4
          %s568 = sadd.s32 %s566, %s567
          %s569 = smul.addr %s568, 8
          %s570 = scalar_lea.vmem %s13, %s569
        $region72: #{node_encoder_forward.1} parent=47 // pred_fallthru
          _
      $region48: #{node_encoder_forward.1} parent=5 // pred_fallthru
        _
      %p571 = scmp.le.s32.totalorder 1, %s28
      %p572 = scmp.lt.s32.totalorder %s28, 9
      %p573 = pnand %p571, %p572
      %p574 = pneg %p573
      // Predicated region
      $region73: #{node_encoder_forward.1} parent=5 // pred_check
        _
      $region74: #{node_encoder_forward.1} parent=5 // pred_check_branch
        %576 = sbr.rel (%p573) target = $region76
      $region75: #{node_encoder_forward.1} parent=5 // pred_region
        %s577 = ssub.s32 %s28, 1
        %s578 = sand.u32 %s124, 1
        %s579 = scalar_lea.sflag [#allocation3], %s578
        %s580 = sand.u32 %s124, 1
        %s581 = smul.addr %s580, 8
        %s582 = scalar_lea.vmem [#allocation2], %s581
        // Predicated region
        $region77: #{node_encoder_forward.1} parent=75 // pred_check
          %p583 = pneg %p137
        $region78: #{node_encoder_forward.1} parent=75 // pred_check_branch
          %585 = sbr.rel (%p583) target = $region80
        $region79: #{node_encoder_forward.1} parent=75 // pred_region
          %586 = dma.done %s579, 128
        $region80: #{node_encoder_forward.1} parent=75 // pred_fallthru
          _
        // Predicated region
        $region81: #{node_encoder_forward.1} parent=75 // pred_check
          %p587 = pneg %p252
        $region82: #{node_encoder_forward.1} parent=75 // pred_check_branch
          %589 = sbr.rel (%p587) target = $region84
        $region83: #{node_encoder_forward.1} parent=75 // pred_region
          %590 = dma.done [#allocation6], 512
        $region84: #{node_encoder_forward.1} parent=75 // pred_fallthru
          _
        // Predicated region
        $region85: #{node_encoder_forward.1} parent=75 // pred_check
          %p591 = pneg %p294
        $region86: #{node_encoder_forward.1} parent=75 // pred_check_branch
          %593 = sbr.rel (%p591) target = $region88
        $region87: #{node_encoder_forward.1} parent=75 // pred_region
          %594 = dma.done [#allocation6], 512
        $region88: #{node_encoder_forward.1} parent=75 // pred_fallthru
          _
        // Predicated region
        $region89: #{node_encoder_forward.1} parent=75 // pred_check
          %p595 = pneg %p315
        $region90: #{node_encoder_forward.1} parent=75 // pred_check_branch
          %597 = sbr.rel (%p595) target = $region92
        $region91: #{node_encoder_forward.1} parent=75 // pred_region
          %598 = dma.done [#allocation9], 16
        $region92: #{node_encoder_forward.1} parent=75 // pred_fallthru
          _
        // Predicated region
        $region93: #{node_encoder_forward.1} parent=75 // pred_check
          %p599 = pneg %p357
        $region94: #{node_encoder_forward.1} parent=75 // pred_check_branch
          %601 = sbr.rel (%p599) target = $region96
        $region95: #{node_encoder_forward.1} parent=75 // pred_region
          %602 = dma.done [#allocation9], 16
        $region96: #{node_encoder_forward.1} parent=75 // pred_fallthru
          _
        %p603 = scmp.lt.s32.totalorder %s38, 1
        %s604 = scalar_select %p603, %s38, 1
        %p605 = scmp.lt.s32.totalorder %s39, 3
        %s606 = scalar_select %p605, %s39, 3
        %p607 = scmp.lt.s32.totalorder %s40, 0
        %s608 = scalar_select %p607, %s40, 0
        %s609 = sadd.s32 %s608, %s606
        %s610 = smul.addr %s604, 4
        %s611 = sadd.s32 %s609, %s610
        %s612 = smul.addr %s611, 8
        %s613 = scalar_lea.vmem %s0, %s612
        %p614 = pneg %p77
        %p615 = pneg %p74
        %p616 = scmp.lt.s32.totalorder %s38, 1
        %s617 = scalar_select %p616, %s38, 1
        %p618 = scmp.lt.s32.totalorder %s39, 3
        %s619 = scalar_select %p618, %s39, 3
        %p620 = scmp.lt.s32.totalorder %s40, 0
        %s621 = scalar_select %p620, %s40, 0
        %s622 = sadd.s32 %s621, %s619
        %s623 = smul.addr %s617, 4
        %s624 = sadd.s32 %s622, %s623
        %s625 = smul.addr %s624, 8
        %s626 = scalar_lea.vmem %s1, %s625
        %p627 = pneg %p107
        %p628 = pneg %p104
        %s629 = sand.u32 %s124, 1
        %s630 = scalar_lea.sflag [#allocation3], %s629
        %s631 = sand.u32 %s124, 1
        %s632 = smul.addr %s631, 8
        %s633 = scalar_lea.vmem [#allocation2], %s632
        %p634 = pneg %p137
        %p635 = pneg %p134
        %p636 = scmp.lt.s32.totalorder %s39, 3
        %s637 = scalar_select %p636, %s39, 3
        %s638 = scalar_lea.vmem %s3, %s637
        %p639 = pneg %p163
        %p640 = pneg %p160
        %p641 = scmp.lt.s32.totalorder %s38, 1
        %s642 = scalar_select %p641, %s38, 1
        %s643 = scalar_lea.vmem %s4, %s642
        %p644 = pneg %p189
        %p645 = pneg %p186
        %p646 = pneg %p210
        %p647 = pneg %p207
        %p648 = pneg %p231
        %p649 = pneg %p228
        %p650 = pneg %p252
        %p651 = pneg %p249
        %p652 = pneg %p273
        %p653 = pneg %p270
        %p654 = pneg %p294
        %p655 = pneg %p291
        %p656 = pneg %p315
        %p657 = pneg %p312
        %p658 = pneg %p336
        %p659 = pneg %p333
        %p660 = pneg %p357
        %p661 = pneg %p354
        %p662 = scmp.lt.s32.totalorder %s38, 1
        %s663 = scalar_select %p662, %s38, 1
        %p664 = scmp.lt.s32.totalorder %s39, 3
        %s665 = scalar_select %p664, %s39, 3
        %p666 = scmp.lt.s32.totalorder %s40, 0
        %s667 = scalar_select %p666, %s40, 0
        %s668 = sadd.s32 %s667, %s665
        %s669 = smul.addr %s663, 4
        %s670 = sadd.s32 %s668, %s669
        %s671 = smul.addr %s670, 8
        %s672 = scalar_lea.vmem %s13, %s671
        %p673 = pneg %p387
        %p674 = pneg %p384
        %p675 = pneg %p417
        %p676 = pneg %p414
        %s677 = sand.u32 %s404, 1
        %s678 = scalar_lea.sflag [#allocation4], %s677
        %s679 = sand.u32 %s404, 1
        %s680 = smul.addr %s679, 8
        %s681 = scalar_lea.vmem [#allocation11], %s680
        %p682 = scmp.lt.s32.totalorder %s38, 1
        %s683 = scalar_select %p682, %s38, 1
        %p684 = scmp.lt.s32.totalorder %s39, 3
        %s685 = scalar_select %p684, %s39, 3
        %p686 = scmp.lt.s32.totalorder %s40, 0
        %s687 = scalar_select %p686, %s40, 0
        %s688 = sadd.s32 %s687, %s685
        %s689 = smul.addr %s683, 4
        %s690 = sadd.s32 %s688, %s689
        %s691 = smul.addr %s690, 8
        %s692 = scalar_lea.vmem %s0, %s691
        %p693 = scmp.lt.s32.totalorder %s38, 1
        %s694 = scalar_select %p693, %s38, 1
        %p695 = scmp.lt.s32.totalorder %s39, 3
        %s696 = scalar_select %p695, %s39, 3
        %p697 = scmp.lt.s32.totalorder %s40, 0
        %s698 = scalar_select %p697, %s40, 0
        %s699 = sadd.s32 %s698, %s696
        %s700 = smul.addr %s694, 4
        %s701 = sadd.s32 %s699, %s700
        %s702 = smul.addr %s701, 8
        %s703 = scalar_lea.vmem %s1, %s702
        %p704 = scmp.lt.s32.totalorder %s39, 3
        %s705 = scalar_select %p704, %s39, 3
        %s706 = scalar_lea.vmem %s3, %s705
        %p707 = scmp.lt.s32.totalorder %s38, 1
        %s708 = scalar_select %p707, %s38, 1
        %s709 = scalar_lea.vmem %s4, %s708
        %p710 = scmp.lt.s32.totalorder %s38, 1
        %s711 = scalar_select %p710, %s38, 1
        %p712 = scmp.lt.s32.totalorder %s39, 3
        %s713 = scalar_select %p712, %s39, 3
        %p714 = scmp.lt.s32.totalorder %s40, 0
        %s715 = scalar_select %p714, %s40, 0
        %s716 = sadd.s32 %s715, %s713
        %s717 = smul.addr %s711, 4
        %s718 = sadd.s32 %s716, %s717
        %s719 = smul.addr %s718, 8
        %s720 = scalar_lea.vmem %s13, %s719
        %v721 = vld [vmem:[%s692] sm:$0xff]
        %v722 = vld [vmem:[%s703] sm:$0xff]
        %v723 = vld [vmem:[%s582] sm:$0xff]
        %v724 = vld [vmem:[%s5] sm:$0xff]
        %v725 = vld [vmem:[%s5 + $0x8] sm:$0xff]
        %v726 = vld [vmem:[%s5 + $0x10] sm:$0xff]
        %v727 = vld [vmem:[%s5 + $0x18] sm:$0xff]
        %v728 = vld [vmem:[%s6] sm:$0xff]
        %v729 = vld [vmem:[%s6 + $0x8] sm:$0xff]
        %v730 = vld [vmem:[%s6 + $0x10] sm:$0xff]
        %v731 = vld [vmem:[%s6 + $0x18] sm:$0xff]
        %vm732 = vcmask 261120
        %v734 = vsel %vm732, %v722, 0
        %736 = vmatprep.subr.mxu0 0.0
        %737 = vmatpush1.msra.mxu0 %v728
        %738 = vmatprep.subr.mxu0 0.0
        %739 = vmatpush1.msra.mxu0 %v729
        %740 = vmatprep.subr.mxu0 0.0
        %741 = vmatpush1.msra.mxu0 %v730
        %742 = vmatprep.subr.mxu0 0.0
        %743 = vmatpush1.msra.mxu0 %v731
        %744 = vmatprep.subr.mxu0 0.0
        %745 = vmatpush1.msra.mxu0 0.0
        %746 = vmatprep.subr.mxu0 0.0
        %747 = vmatpush1.msra.mxu0 0.0
        %748 = vmatprep.subr.mxu0 0.0
        %749 = vmatpush1.msra.mxu0 0.0
        %750 = vmatprep.subr.mxu0 0.0
        %751 = vmatpush1.msra.mxu0 0.0
        %752 = vmatprep.subr.mxu0 0.0
        %753 = vmatpush1.msra.mxu0 0.0
        %754 = vmatprep.subr.mxu0 0.0
        %755 = vmatpush1.msra.mxu0 0.0
        %756 = vmatprep.subr.mxu0 0.0
        %757 = vmatpush1.msra.mxu0 0.0
        %758 = vmatprep.subr.mxu0 0.0
        %759 = vmatpush1.msra.mxu0 0.0
        %760 = vmatprep.subr.mxu0 0.0
        %761 = vmatpush1.msra.mxu0 0.0
        %762 = vmatprep.subr.mxu0 0.0
        %763 = vmatpush1.msra.mxu0 0.0
        %764 = vmatprep.subr.mxu0 0.0
        %765 = vmatpush1.msra.mxu0 0.0
        %766 = vmatprep.subr.mxu0 0.0
        %767 = vmatpush1.msra.mxu0 0.0
        %768 = vmatprep.subr.mxu0 0.0
        %769 = vmatpush1.msra.mxu0 0.0
        %770 = vmatprep.subr.mxu0 0.0
        %771 = vmatpush1.msra.mxu0 0.0
        %772 = vmatprep.subr.mxu0 0.0
        %773 = vmatpush1.msra.mxu0 0.0
        %774 = vmatprep.subr.mxu0 0.0
        %775 = vmatpush1.msra.mxu0 0.0
        %776 = vmatprep.subr.mxu0 0.0
        %777 = vmatpush1.msra.mxu0 0.0
        %778 = vmatprep.subr.mxu0 0.0
        %779 = vmatpush1.msra.mxu0 0.0
        %780 = vmatprep.subr.mxu0 0.0
        %781 = vmatpush1.msra.mxu0 0.0
        %782 = vmatprep.subr.mxu0 0.0
        %783 = vmatpush1.msra.mxu0 0.0
        %784 = vmatprep.subr.mxu0 0.0
        %785 = vmatpush1.msra.mxu0 0.0
        %786 = vmatprep.subr.mxu0 0.0
        %787 = vmatpush1.msra.mxu0 0.0
        %788 = vmatprep.subr.mxu0 0.0
        %789 = vmatpush1.msra.mxu0 0.0
        %790 = vmatprep.subr.mxu0 0.0
        %791 = vmatpush1.msra.mxu0 0.0
        %792 = vmatprep.subr.mxu0 0.0
        %793 = vmatpush1.msra.mxu0 0.0
        %794 = vmatprep.subr.mxu0 0.0
        %795 = vmatpush1.msra.mxu0 0.0
        %796 = vmatprep.subr.mxu0 0.0
        %797 = vmatpush1.msra.mxu0 0.0
        %798 = vmatprep.subr.mxu0 0.0
        %799 = vmatpush1.msra.mxu0 0.0
        %800 = vmatprep.mubr.f32.mxu0 0.0
        %801 = vmatmul.mubr.f32.gmra.mrb[0].mxu0 %v734
        %v802 = vpop.f32.mrb[0].mxu0
        %v803 = vadd.f32 0.0, %v802
        %v804 = vpop.f32.mrb[0].mxu0
        %805 = vdwg.mxu0
        %v807 = vsel %vm732, %v721, 0
        %809 = vmatprep.subr.mxu0 0.0
        %810 = vmatpush1.msra.mxu0 %v724
        %811 = vmatprep.subr.mxu0 0.0
        %812 = vmatpush1.msra.mxu0 %v725
        %813 = vmatprep.subr.mxu0 0.0
        %814 = vmatpush1.msra.mxu0 %v726
        %815 = vmatprep.subr.mxu0 0.0
        %816 = vmatpush1.msra.mxu0 %v727
        %817 = vmatprep.subr.mxu0 0.0
        %818 = vmatpush1.msra.mxu0 0.0
        %819 = vmatprep.subr.mxu0 0.0
        %820 = vmatpush1.msra.mxu0 0.0
        %821 = vmatprep.subr.mxu0 0.0
        %822 = vmatpush1.msra.mxu0 0.0
        %823 = vmatprep.subr.mxu0 0.0
        %824 = vmatpush1.msra.mxu0 0.0
        %825 = vmatprep.subr.mxu0 0.0
        %826 = vmatpush1.msra.mxu0 0.0
        %827 = vmatprep.subr.mxu0 0.0
        %828 = vmatpush1.msra.mxu0 0.0
        %829 = vmatprep.subr.mxu0 0.0
        %830 = vmatpush1.msra.mxu0 0.0
        %831 = vmatprep.subr.mxu0 0.0
        %832 = vmatpush1.msra.mxu0 0.0
        %833 = vmatprep.subr.mxu0 0.0
        %834 = vmatpush1.msra.mxu0 0.0
        %835 = vmatprep.subr.mxu0 0.0
        %836 = vmatpush1.msra.mxu0 0.0
        %837 = vmatprep.subr.mxu0 0.0
        %838 = vmatpush1.msra.mxu0 0.0
        %839 = vmatprep.subr.mxu0 0.0
        %840 = vmatpush1.msra.mxu0 0.0
        %841 = vmatprep.subr.mxu0 0.0
        %842 = vmatpush1.msra.mxu0 0.0
        %843 = vmatprep.subr.mxu0 0.0
        %844 = vmatpush1.msra.mxu0 0.0
        %845 = vmatprep.subr.mxu0 0.0
        %846 = vmatpush1.msra.mxu0 0.0
        %847 = vmatprep.subr.mxu0 0.0
        %848 = vmatpush1.msra.mxu0 0.0
        %849 = vmatprep.subr.mxu0 0.0
        %850 = vmatpush1.msra.mxu0 0.0
        %851 = vmatprep.subr.mxu0 0.0
        %852 = vmatpush1.msra.mxu0 0.0
        %853 = vmatprep.subr.mxu0 0.0
        %854 = vmatpush1.msra.mxu0 0.0
        %855 = vmatprep.subr.mxu0 0.0
        %856 = vmatpush1.msra.mxu0 0.0
        %857 = vmatprep.subr.mxu0 0.0
        %858 = vmatpush1.msra.mxu0 0.0
        %859 = vmatprep.subr.mxu0 0.0
        %860 = vmatpush1.msra.mxu0 0.0
        %861 = vmatprep.subr.mxu0 0.0
        %862 = vmatpush1.msra.mxu0 0.0
        %863 = vmatprep.subr.mxu0 0.0
        %864 = vmatpush1.msra.mxu0 0.0
        %865 = vmatprep.subr.mxu0 0.0
        %866 = vmatpush1.msra.mxu0 0.0
        %867 = vmatprep.subr.mxu0 0.0
        %868 = vmatpush1.msra.mxu0 0.0
        %869 = vmatprep.subr.mxu0 0.0
        %870 = vmatpush1.msra.mxu0 0.0
        %871 = vmatprep.subr.mxu0 0.0
        %872 = vmatpush1.msra.mxu0 0.0
        %873 = vmatprep.mubr.f32.mxu0 0.0
        %874 = vmatmul.mubr.f32.gmra.mrb[0].mxu0 %v807
        %v875 = vpop.f32.mrb[0].mxu0
        %v876 = vadd.f32 %v803, %v875
        %v877 = vpop.f32.mrb[0].mxu0
        %878 = vdwg.mxu0
        %v879 = vld [vmem:[#allocation5] sm:$0xff]
        %v880 = vld [vmem:[#allocation5 + $0x8] sm:$0xff]
        %v881 = vld [vmem:[#allocation5 + $0x10] sm:$0xff]
        %v882 = vld [vmem:[#allocation5 + $0x18] sm:$0xff]
        %v884 = vsel %vm732, %v723, 0
        %886 = vmatprep.subr.mxu0 0.0
        %887 = vmatpush1.msra.mxu0 %v879
        %888 = vmatprep.subr.mxu0 0.0
        %889 = vmatpush1.msra.mxu0 %v880
        %890 = vmatprep.subr.mxu0 0.0
        %891 = vmatpush1.msra.mxu0 %v881
        %892 = vmatprep.subr.mxu0 0.0
        %893 = vmatpush1.msra.mxu0 %v882
        %894 = vmatprep.subr.mxu0 0.0
        %895 = vmatpush1.msra.mxu0 0.0
        %896 = vmatprep.subr.mxu0 0.0
        %897 = vmatpush1.msra.mxu0 0.0
        %898 = vmatprep.subr.mxu0 0.0
        %899 = vmatpush1.msra.mxu0 0.0
        %900 = vmatprep.subr.mxu0 0.0
        %901 = vmatpush1.msra.mxu0 0.0
        %902 = vmatprep.subr.mxu0 0.0
        %903 = vmatpush1.msra.mxu0 0.0
        %904 = vmatprep.subr.mxu0 0.0
        %905 = vmatpush1.msra.mxu0 0.0
        %906 = vmatprep.subr.mxu0 0.0
        %907 = vmatpush1.msra.mxu0 0.0
        %908 = vmatprep.subr.mxu0 0.0
        %909 = vmatpush1.msra.mxu0 0.0
        %910 = vmatprep.subr.mxu0 0.0
        %911 = vmatpush1.msra.mxu0 0.0
        %912 = vmatprep.subr.mxu0 0.0
        %913 = vmatpush1.msra.mxu0 0.0
        %914 = vmatprep.subr.mxu0 0.0
        %915 = vmatpush1.msra.mxu0 0.0
        %916 = vmatprep.subr.mxu0 0.0
        %917 = vmatpush1.msra.mxu0 0.0
        %918 = vmatprep.subr.mxu0 0.0
        %919 = vmatpush1.msra.mxu0 0.0
        %920 = vmatprep.subr.mxu0 0.0
        %921 = vmatpush1.msra.mxu0 0.0
        %922 = vmatprep.subr.mxu0 0.0
        %923 = vmatpush1.msra.mxu0 0.0
        %924 = vmatprep.subr.mxu0 0.0
        %925 = vmatpush1.msra.mxu0 0.0
        %926 = vmatprep.subr.mxu0 0.0
        %927 = vmatpush1.msra.mxu0 0.0
        %928 = vmatprep.subr.mxu0 0.0
        %929 = vmatpush1.msra.mxu0 0.0
        %930 = vmatprep.subr.mxu0 0.0
        %931 = vmatpush1.msra.mxu0 0.0
        %932 = vmatprep.subr.mxu0 0.0
        %933 = vmatpush1.msra.mxu0 0.0
        %934 = vmatprep.subr.mxu0 0.0
        %935 = vmatpush1.msra.mxu0 0.0
        %936 = vmatprep.subr.mxu0 0.0
        %937 = vmatpush1.msra.mxu0 0.0
        %938 = vmatprep.subr.mxu0 0.0
        %939 = vmatpush1.msra.mxu0 0.0
        %940 = vmatprep.subr.mxu0 0.0
        %941 = vmatpush1.msra.mxu0 0.0
        %942 = vmatprep.subr.mxu0 0.0
        %943 = vmatpush1.msra.mxu0 0.0
        %944 = vmatprep.subr.mxu0 0.0
        %945 = vmatpush1.msra.mxu0 0.0
        %946 = vmatprep.subr.mxu0 0.0
        %947 = vmatpush1.msra.mxu0 0.0
        %948 = vmatprep.subr.mxu0 0.0
        %949 = vmatpush1.msra.mxu0 0.0
        %950 = vmatprep.mubr.f32.mxu0 0.0
        %951 = vmatmul.mubr.f32.gmra.mrb[0].mxu0 %v884
        %v952 = vpop.f32.mrb[0].mxu0
        %v953 = vadd.f32 0.0, %v952
        %v954 = vpop.f32.mrb[0].mxu0
        %955 = vdwg.mxu0
        %v956 = vadd.f32 %v876, %v953
        %v957 = vld [vmem:[%s706] sm:$0x1]
        %v959 = vlaneseq
        %v960 = vshrl.u32 %v959, 7
        %v961 = vsub.s32 0, %v960
        %v962 = vrot.slane %v957, %v961
        %v964 = vadd.f32 %v956, %v962
        %v965 = vld [vmem:[%s709] sm:$0x1]
        %v967 = vlaneseq
        %v968 = vshrl.u32 %v967, 7
        %v969 = vsub.s32 0, %v968
        %v970 = vrot.slane %v965, %v969
        %v972 = vadd.f32 %v964, %v970
        %v973 = vld [vmem:[%s8] sm:$0x1]
        %v975 = vlaneseq
        %v976 = vshrl.u32 %v975, 7
        %v977 = vsub.s32 0, %v976
        %v978 = vrot.slane %v973, %v977
        %v980 = vadd.f32 %v972, %v978
        %v981 = vmax.f32 %v980, 0.0
        %v982 = vld [vmem:[#allocation7] sm:$0xff]
        %v983 = vld [vmem:[#allocation7 + $0x8] sm:$0xff]
        %v984 = vld [vmem:[#allocation7 + $0x10] sm:$0xff]
        %v985 = vld [vmem:[#allocation7 + $0x18] sm:$0xff]
        %v986 = vld [vmem:[#allocation8] sm:$0x1]
        %v988 = vlaneseq
        %v989 = vshrl.u32 %v988, 7
        %v990 = vsub.s32 0, %v989
        %v991 = vrot.slane %v986, %v990
        %v994 = vsel %vm732, %v981, 0
        %996 = vmatprep.subr.mxu0 0.0
        %997 = vmatpush1.msra.mxu0 %v982
        %998 = vmatprep.subr.mxu0 0.0
        %999 = vmatpush1.msra.mxu0 %v983
        %1000 = vmatprep.subr.mxu0 0.0
        %1001 = vmatpush1.msra.mxu0 %v984
        %1002 = vmatprep.subr.mxu0 0.0
        %1003 = vmatpush1.msra.mxu0 %v985
        %1004 = vmatprep.subr.mxu0 0.0
        %1005 = vmatpush1.msra.mxu0 0.0
        %1006 = vmatprep.subr.mxu0 0.0
        %1007 = vmatpush1.msra.mxu0 0.0
        %1008 = vmatprep.subr.mxu0 0.0
        %1009 = vmatpush1.msra.mxu0 0.0
        %1010 = vmatprep.subr.mxu0 0.0
        %1011 = vmatpush1.msra.mxu0 0.0
        %1012 = vmatprep.subr.mxu0 0.0
        %1013 = vmatpush1.msra.mxu0 0.0
        %1014 = vmatprep.subr.mxu0 0.0
        %1015 = vmatpush1.msra.mxu0 0.0
        %1016 = vmatprep.subr.mxu0 0.0
        %1017 = vmatpush1.msra.mxu0 0.0
        %1018 = vmatprep.subr.mxu0 0.0
        %1019 = vmatpush1.msra.mxu0 0.0
        %1020 = vmatprep.subr.mxu0 0.0
        %1021 = vmatpush1.msra.mxu0 0.0
        %1022 = vmatprep.subr.mxu0 0.0
        %1023 = vmatpush1.msra.mxu0 0.0
        %1024 = vmatprep.subr.mxu0 0.0
        %1025 = vmatpush1.msra.mxu0 0.0
        %1026 = vmatprep.subr.mxu0 0.0
        %1027 = vmatpush1.msra.mxu0 0.0
        %1028 = vmatprep.subr.mxu0 0.0
        %1029 = vmatpush1.msra.mxu0 0.0
        %1030 = vmatprep.subr.mxu0 0.0
        %1031 = vmatpush1.msra.mxu0 0.0
        %1032 = vmatprep.subr.mxu0 0.0
        %1033 = vmatpush1.msra.mxu0 0.0
        %1034 = vmatprep.subr.mxu0 0.0
        %1035 = vmatpush1.msra.mxu0 0.0
        %1036 = vmatprep.subr.mxu0 0.0
        %1037 = vmatpush1.msra.mxu0 0.0
        %1038 = vmatprep.subr.mxu0 0.0
        %1039 = vmatpush1.msra.mxu0 0.0
        %1040 = vmatprep.subr.mxu0 0.0
        %1041 = vmatpush1.msra.mxu0 0.0
        %1042 = vmatprep.subr.mxu0 0.0
        %1043 = vmatpush1.msra.mxu0 0.0
        %1044 = vmatprep.subr.mxu0 0.0
        %1045 = vmatpush1.msra.mxu0 0.0
        %1046 = vmatprep.subr.mxu0 0.0
        %1047 = vmatpush1.msra.mxu0 0.0
        %1048 = vmatprep.subr.mxu0 0.0
        %1049 = vmatpush1.msra.mxu0 0.0
        %1050 = vmatprep.subr.mxu0 0.0
        %1051 = vmatpush1.msra.mxu0 0.0
        %1052 = vmatprep.subr.mxu0 0.0
        %1053 = vmatpush1.msra.mxu0 0.0
        %1054 = vmatprep.subr.mxu0 0.0
        %1055 = vmatpush1.msra.mxu0 0.0
        %1056 = vmatprep.subr.mxu0 0.0
        %1057 = vmatpush1.msra.mxu0 0.0
        %1058 = vmatprep.subr.mxu0 0.0
        %1059 = vmatpush1.msra.mxu0 0.0
        %1060 = vmatprep.mubr.f32.mxu0 0.0
        %1061 = vmatmul.mubr.f32.gmra.mrb[0].mxu0 %v994
        %v1062 = vpop.f32.mrb[0].mxu0
        %v1063 = vadd.f32 %v991, %v1062
        %v1064 = vpop.f32.mrb[0].mxu0
        %1065 = vdwg.mxu0
        %v1066 = vsel %vm732, %v1063, 0.0
        %1067 = vadd.xlane.f32.xlu0 %v1066
        %v1068 = vpop.xlane.xlu0 %1067
        %v1069 = vrcp.pop 32.0
        %v1070 = vmul.f32 %v1068, %v1069
        %v1071 = vsub.f32 %v1063, %v1070
        %v1072 = vmul.f32 %v1071, %v1071
        %v1073 = vsel %vm732, %v1072, 0.0
        %1074 = vadd.xlane.f32.xlu0 %v1073
        %v1075 = vpop.xlane.xlu0 %1074
        %v1076 = vmul.f32 %v1075, %v1069
        %v1077 = vadd.f32 %v1076, 1e-05
        %v1078 = vrsqrt.pop %v1077
        %v1079 = vmul.f32 %v1071, %v1078
        %v1080 = vld [vmem:[%s11] sm:$0x1]
        %v1082 = vlaneseq
        %v1083 = vshrl.u32 %v1082, 7
        %v1084 = vsub.s32 0, %v1083
        %v1085 = vrot.slane %v1080, %v1084
        %v1087 = vmul.f32 %v1079, %v1085
        %v1088 = vld [vmem:[#allocation10] sm:$0x1]
        %v1090 = vlaneseq
        %v1091 = vshrl.u32 %v1090, 7
        %v1092 = vsub.s32 0, %v1091
        %v1093 = vrot.slane %v1088, %v1092
        %v1095 = vadd.f32 %v1087, %v1093
        %v1096 = vld [vmem:[%s720] sm:$0xff]
        %1098 = vset.pattern.permute.xlu0 0
        %1099 = vperm.xlu0 %1098, %v1096
        %v1100 = vpop.permute.xlu0 %1099
        %v1102 = vmul.f32 %v1095, %v1100
        %1103 = vst.msk [vmem:[%s681] sm:$0xff] %vm732, %v1102
        %s1104 = sand.u32 %s404, 1
        %s1105 = scalar_lea.sflag [#allocation4], %s1104
        %s1106 = sand.u32 %s404, 1
        %s1107 = smul.addr %s1106, 8
        %s1108 = scalar_lea.vmem [#allocation11], %s1107
        // Predicated region
        $region97: #{node_encoder_forward.1} parent=75 // pred_check
          %p1109 = pneg %p414
        $region98: #{node_encoder_forward.1} parent=75 // pred_check_branch
          %1111 = sbr.rel (%p1109) target = $region100
        $region99: #{node_encoder_forward.1} parent=75 // pred_region
          %s1113 = ssub.s32 128, 128
          %1114 = vsyncadd %s1105, %s1113
          %s1115 = sadd.s32 %s40, %s39
          %s1116 = smul.addr %s38, 4
          %s1117 = sadd.s32 %s1115, %s1116
          %s1118 = smul.addr %s1117, 128
          %s1119 = scalar_lea.hbm %s14, %s1118
          %s1121 = sshll.u32 %s1108, 4
          %s1122 = int_to_ptr.vmem [resolvable:$true] %s1121
          %1124 = dma.vmem_to_hbm [thread:$0]  %s1122, 128, %s1119, %s1105
        $region100: #{node_encoder_forward.1} parent=75 // pred_fallthru
          _
      $region76: #{node_encoder_forward.1} parent=5 // pred_fallthru
        _
      %p1125 = scmp.le.s32.totalorder 2, %s28
      // Predicated region
      $region101: #{node_encoder_forward.1} parent=5 // pred_check
        %p1126 = pneg %p1125
      $region102: #{node_encoder_forward.1} parent=5 // pred_check_branch
        %1128 = sbr.rel (%p1126) target = $region104
      $region103: #{node_encoder_forward.1} parent=5 // pred_region
        %s1129 = ssub.s32 %s28, 2
        // Predicated region
        $region105: #{node_encoder_forward.1} parent=103 // pred_check
          %p1130 = pneg %p420
        $region106: #{node_encoder_forward.1} parent=103 // pred_check_branch
          %1132 = sbr.rel (%p1130) target = $region108
        $region107: #{node_encoder_forward.1} parent=103 // pred_region
          %s1133 = sand.u32 %s405, 1
          %s1134 = scalar_lea.sflag [#allocation4], %s1133
          %s1135 = sand.u32 %s405, 1
          %s1136 = smul.addr %s1135, 8
          %s1137 = scalar_lea.vmem [#allocation11], %s1136
          %1138 = dma.done %s1134, 128
        $region108: #{node_encoder_forward.1} parent=103 // pred_fallthru
          _
      $region104: #{node_encoder_forward.1} parent=5 // pred_fallthru
        _
    $region6: #{node_encoder_forward.1} parent=1 // loop_footer
      %s32 = sadd.s32 1, %s28
    $region7: #{node_encoder_forward.1} parent=1 // loop_footer_branch
      %27 = sbr.rel target = $region3
    $region8: #{node_encoder_forward.1} parent=1 // loop_exit
      _
    %1139 = vsyncpa [#allocation3], 1
    %s1140 = scalar_lea.sflag [#allocation3], 1
    %1141 = vsyncpa %s1140, 1
    %1142 = vsyncpa [#allocation6], 1
    %1143 = vsyncpa [#allocation9], 1
    %1144 = vsyncpa [#allocation4], 1
    %s1145 = scalar_lea.sflag [#allocation4], 1
    %1146 = vsyncpa %s1145, 1

</llo_original>
